<compile_context>
chip_gen: v5e
topology: v5e:2x2
jax: 0.10.0
libtpu: 0.0.40
codegen_flags: <defaults>
</compile_context>

<pallas_src>
import math
import functools

import jax
import jax.numpy as jnp
from jax.experimental import pallas as pl
from jax.experimental.pallas import tpu as pltpu


def _pick_tile(n, cap=256):
    """Largest power-of-two tile <= cap that divides n (falls back to n)."""
    for cand in (256, 128, 64, 32, 16, 8):
        if cand <= cap and cand <= n and n % cand == 0:
            return cand
    return n


def _compiler_params(dimension_semantics):
    """Generation-aware compiler params (v7x only has 64 MiB of VMEM)."""
    kwargs = dict(dimension_semantics=dimension_semantics)
    try:
        cap = int(pltpu.get_tpu_info().vmem_capacity_bytes)
        # ~75% of physical: 96 MiB on 128 MiB parts, 48 MiB on v7x.
        kwargs["vmem_limit_bytes"] = max(32 * 1024 * 1024, (cap * 3) // 4)
    except Exception:
        pass  # fall back to the compiler's default scoped-VMEM limit
    return pltpu.CompilerParams(**kwargs)


# ---------------------------------------------------------------------------
# Kernel A: fused per-head QKV projection + rotate-half RoPE
# ---------------------------------------------------------------------------
def _qkv_rope_kernel(x_ref, cos_ref, sin_ref, wqkv_ref, q_ref, k_ref, v_ref,
                     *, head_dim):
    hd = head_dim
    half = hd // 2
    x = x_ref[0]                                   # (tq, C)  bf16
    w = wqkv_ref[0]                                # (C, 3hd) bf16, [q|k|v] of head h
    qkv = jnp.dot(x, w, preferred_element_type=jnp.float32)   # (tq, 3hd) f32

    cos = cos_ref[...]                             # (tq, hd//2) f32
    sin = sin_ref[...]

    def rope(t):
        # De-interleaved (rotate-half) RoPE: t = [a | b],
        # out = [a*cos - b*sin | b*cos + a*sin].
        a = t[:, :half]
        b = t[:, half:]
        return jnp.concatenate([a * cos - b * sin, b * cos + a * sin], axis=-1)

    q_ref[0, 0] = rope(qkv[:, 0 * hd:1 * hd]).astype(q_ref.dtype)
    k_ref[0, 0] = rope(qkv[:, 1 * hd:2 * hd]).astype(k_ref.dtype)
    v_ref[0, 0] = qkv[:, 2 * hd:3 * hd].astype(v_ref.dtype)


def _qkv_rope(x_b, cos, sin, wqkv_g, *, n_head, tq):
    B, T, C = x_b.shape
    hd = C // n_head
    half = hd // 2
    nq = T // tq
    kernel = functools.partial(_qkv_rope_kernel, head_dim=hd)
    out_sds = jax.ShapeDtypeStruct((B, n_head, T, hd), jnp.bfloat16)
    qkv_spec = pl.BlockSpec((1, 1, tq, hd), lambda b, i, h: (b, h, i, 0))
    return pl.pallas_call(
        kernel,
        out_shape=(out_sds, out_sds, out_sds),
        grid_spec=pltpu.PrefetchScalarGridSpec(
            num_scalar_prefetch=0,
            grid=(B, nq, n_head),
            in_specs=[
                pl.BlockSpec((1, tq, C), lambda b, i, h: (b, i, 0)),      # x
                pl.BlockSpec((tq, half), lambda b, i, h: (i, 0)),         # cos
                pl.BlockSpec((tq, half), lambda b, i, h: (i, 0)),         # sin
                pl.BlockSpec((1, C, 3 * hd), lambda b, i, h: (h, 0, 0)),  # w_qkv[h]
            ],
            out_specs=[qkv_spec, qkv_spec, qkv_spec],
        ),
        compiler_params=_compiler_params(("parallel", "parallel", "parallel")),
    )(x_b, cos, sin, wqkv_g)


# ---------------------------------------------------------------------------
# Kernel B: flash attention (online softmax, causal block skipping) + c_proj
# ---------------------------------------------------------------------------
def _flash_proj_kernel(q_ref, k_ref, v_ref, wproj_ref, o_ref,
                       m_ref, l_ref, acc_ref, *, tq, tk, n_head, head_dim):
    i = pl.program_id(1)          # q-tile index
    j = pl.program_id(2)          # kv-tile index (reduction axis)
    nkv = pl.num_programs(2)
    hd = head_dim

    @pl.when(j == 0)
    def _init():
        m_ref[...] = jnp.full(m_ref.shape, -jnp.inf, dtype=m_ref.dtype)
        l_ref[...] = jnp.zeros(l_ref.shape, dtype=l_ref.dtype)
        acc_ref[...] = jnp.zeros(acc_ref.shape, dtype=acc_ref.dtype)

    # Causal block skipping: KV tiles entirely in the future contribute
    # nothing (their DMA is also elided by the clamped index_map).
    @pl.when(j * tk < (i + 1) * tq)
    def _compute():
        # Per-tile causal mask -- a few vregs; no (T,T) mask is ever built.
        row = i * tq + jax.lax.broadcasted_iota(jnp.int32, (tq, tk), 0)
        col = j * tk + jax.lax.broadcasted_iota(jnp.int32, (tq, tk), 1)
        mask = col <= row

        def head_body(h, carry):
            q = q_ref[0, h]                          # (tq, hd) bf16 (pre-scaled)
            k = k_ref[0, h]                          # (tk, hd) bf16
            v = v_ref[0, h]                          # (tk, hd) bf16
            s = jax.lax.dot_general(q, k, (((1,), (1,)), ((), ())),
                                    preferred_element_type=jnp.float32)
            s = jnp.where(mask, s, -1e30)            # keep mask+exp in f32
            m_prev = m_ref[h]                        # (tq, 1) f32
            m_new = jnp.maximum(m_prev, jnp.max(s, axis=-1, keepdims=True))
            alpha = jnp.exp(m_prev - m_new)
            p = jnp.exp(s - m_new)
            l_ref[h] = alpha * l_ref[h] + jnp.sum(p, axis=-1, keepdims=True)
            acc_ref[h] = alpha * acc_ref[h] + jnp.dot(
                p.astype(jnp.bfloat16), v, preferred_element_type=jnp.float32)
            m_ref[h] = m_new
            return carry

        jax.lax.fori_loop(0, n_head, head_body, 0)

    @pl.when(j == nkv - 1)
    def _finalize():
        # Normalize each head (EUP reciprocal), assemble a lane-dense (tq, C)
        # bf16 activation and run ONE full-depth (K=C) output projection.
        heads = []
        for h in range(n_head):                     # static -> static lane offsets
            o_h = acc_ref[h] * pl.reciprocal(l_ref[h], approx=True)
            heads.append(o_h.astype(jnp.bfloat16))
        y = jnp.concatenate(heads, axis=-1)         # (tq, C) bf16
        o_ref[0] = jnp.dot(y, wproj_ref[...],
                           preferred_element_type=jnp.float32).astype(o_ref.dtype)


def _flash_attention_proj(q, k, v, w_proj_b, *, tq, tk):
    B, n_head, T, hd = q.shape
    C = n_head * hd
    nq = T // tq
    nkv = T // tk
    kernel = functools.partial(_flash_proj_kernel, tq=tq, tk=tk,
                               n_head=n_head, head_dim=hd)

    def kv_index(b, i, j):
        # Clamp fully-masked (future) KV tiles to the diagonal tile: the block
        # index then repeats between consecutive steps, so no DMA is issued.
        j_max = ((i + 1) * tq - 1) // tk
        return (b, 0, jnp.minimum(j, j_max), 0)

    return pl.pallas_call(
        kernel,
        out_shape=jax.ShapeDtypeStruct((B, T, C), jnp.bfloat16),
        grid_spec=pltpu.PrefetchScalarGridSpec(
            num_scalar_prefetch=0,
            grid=(B, nq, nkv),
            in_specs=[
                pl.BlockSpec((1, n_head, tq, hd), lambda b, i, j: (b, 0, i, 0)),
                pl.BlockSpec((1, n_head, tk, hd), kv_index),
                pl.BlockSpec((1, n_head, tk, hd), kv_index),
                # w_proj's block never changes -> single-buffer it.
                pl.BlockSpec((C, C), lambda b, i, j: (0, 0),
                             pipeline_mode=pl.Buffered(1)),
            ],
            out_specs=pl.BlockSpec((1, tq, C), lambda b, i, j: (b, i, 0)),
            scratch_shapes=[
                pltpu.VMEM((n_head, tq, 1), jnp.float32),   # m (running max)
                pltpu.VMEM((n_head, tq, 1), jnp.float32),   # l (running denom)
                pltpu.VMEM((n_head, tq, hd), jnp.float32),  # acc (unnormalized PV)
            ],
        ),
        compiler_params=_compiler_params(("parallel", "parallel", "arbitrary")),
    )(q, k, v, w_proj_b)


# ---------------------------------------------------------------------------
# Host-side parameter prep + top-level wrapper
# ---------------------------------------------------------------------------
def prepare_params(w_qkv, w_proj, angles, n_head):
    """One-time host-side weight/table prep.

    * Regroups w_qkv columns per head into (n_head, C, 3*hd) blocks
      [q_h | k_h | v_h], with the Q/K columns de-interleaved per head
      ([0,2,4,...,1,3,5,...]) so RoPE becomes rotate-half in-kernel (the
      attention output is unchanged: consistent permutation of q and k).
    * Folds 1/sqrt(head_dim) into the Q columns (RoPE is linear, so the
      post-RoPE q is scaled identically) -> no score scaling in the kernel.
    * Casts weights to bf16 for the MXU, returns compact (T, hd//2) cos/sin.
    """
    C = w_qkv.shape[0]
    hd = C // n_head
    scale = 1.0 / math.sqrt(hd)
    deint = jnp.concatenate([jnp.arange(0, hd, 2), jnp.arange(1, hd, 2)])
    wq = w_qkv[:, 0 * C:1 * C].reshape(C, n_head, hd)[:, :, deint] * scale
    wk = w_qkv[:, 1 * C:2 * C].reshape(C, n_head, hd)[:, :, deint]
    wv = w_qkv[:, 2 * C:3 * C].reshape(C, n_head, hd)
    wqkv_g = jnp.transpose(jnp.concatenate([wq, wk, wv], axis=-1), (1, 0, 2))
    wqkv_g = wqkv_g.astype(jnp.bfloat16)            # (n_head, C, 3*hd)
    w_proj_b = w_proj.astype(jnp.bfloat16)          # (C, C)
    cos = jnp.cos(angles).astype(jnp.float32)       # (T, hd//2)
    sin = jnp.sin(angles).astype(jnp.float32)
    return wqkv_g, w_proj_b, cos, sin


def causal_self_attention(x, cos, sin, wqkv_g, w_proj_b, n_head, *, tile_cap=256):
    """CausalSelfAttention forward (eval, dropout=0).  Returns bf16 (B,T,C)."""
    B, T, C = x.shape
    assert C % n_head == 0
    hd = C // n_head
    assert hd % 2 == 0, "RoPE needs an even head_dim"
    tq = _pick_tile(T, tile_cap)
    tk = _pick_tile(T, tile_cap)
    x_b = x.astype(jnp.bfloat16)     # bf16 activation I/O halves HBM DMA
    q, k, v = _qkv_rope(x_b, cos, sin, wqkv_g, n_head=n_head, tq=tq)
    return _flash_attention_proj(q, k, v, w_proj_b, tq=tq, tk=tk)


# ---------------------------------------------------------------------------
# Pure-JAX reference (f32 replica of the torch forward, dropout=0, eval)
# ---------------------------------------------------------------------------
def reference(x, w_qkv, w_proj, angles, n_head):
    B, T, C = x.shape
    head_dim = C // n_head
    qkv = x @ w_qkv
    q, k, v = jnp.split(qkv, 3, axis=-1)
    q = q.reshape(B, T, n_head, head_dim)
    k = k.reshape(B, T, n_head, head_dim)
    v = v.reshape(B, T, n_head, head_dim)
    fc = jnp.cos(angles) + 1j * jnp.sin(angles)      # freqs_cis (T, head_dim//2)

    def rope(u):
        uc = u[..., ::2] + 1j * u[..., 1::2]
        uc = uc * fc[None, :, None, :]
        return jnp.stack([uc.real, uc.imag], axis=-1).reshape(u.shape)

    q = rope(q)
    k = rope(k)
    q = q.transpose(0, 2, 1, 3)
    k = k.transpose(0, 2, 1, 3)
    v = v.transpose(0, 2, 1, 3)
    s = jnp.einsum("bhqd,bhkd->bhqk", q, k) / math.sqrt(head_dim)
    mask = jnp.tril(jnp.ones((T, T), dtype=bool))
    s = jnp.where(mask, s, -jnp.inf)
    p = jax.nn.softmax(s, axis=-1)
    y = jnp.einsum("bhqk,bhkd->bhqd", p, v)
    y = y.transpose(0, 2, 1, 3).reshape(B, T, C)
    return y @ w_proj


if __name__ == "__main__":
    B, T, C, n_head = 2, 8, 32, 4
    head_dim = C // n_head

    key = jax.random.PRNGKey(0)
    kx, kq, kp = jax.random.split(key, 3)
    x = jax.random.normal(kx, (B, T, C), dtype=jnp.float32)
    w_qkv = jax.random.normal(kq, (C, 3 * C), dtype=jnp.float32) / math.sqrt(C)
    w_proj = jax.random.normal(kp, (C, C), dtype=jnp.float32) / math.sqrt(C)

    # Rotary angle table (freqs_cis equivalent), theta as in the GPT module.
    theta = 500000.0
    freqs = 1.0 / (theta ** (jnp.arange(0, head_dim, 2, dtype=jnp.float32) / head_dim))
    t = jnp.arange(T, dtype=jnp.float32)
    angles = jnp.outer(t, freqs)                      # (T, head_dim//2)

    wqkv_g, w_proj_b, cos, sin = prepare_params(w_qkv, w_proj, angles, n_head)
    out = causal_self_attention(x, cos, sin, wqkv_g, w_proj_b, n_head)
    out = jax.block_until_ready(out).astype(jnp.float32)

    expected = reference(x, w_qkv, w_proj, angles, n_head)
    err = float(jnp.max(jnp.abs(out - expected)))
    # bf16 activations + bf16 MXU operands -> bf16-level tolerance.
    assert jnp.allclose(out, expected, atol=1e-1, rtol=5e-2), f"max abs err {err}"

    print("KERNEL_OK")
</pallas_src>

<mosaic_0001>
module attributes {stable_mosaic.version = 11 : i64} {
  func.func @_qkv_rope_kernel(%arg0: i32, %arg1: i32, %arg2: i32, %arg3: memref<1x8x32xbf16, #tpu.memory_space<vmem>>, %arg4: memref<8x4xf32, #tpu.memory_space<vmem>>, %arg5: memref<8x4xf32, #tpu.memory_space<vmem>>, %arg6: memref<1x32x24xbf16, #tpu.memory_space<vmem>>, %arg7: memref<1x1x8x8xbf16, #tpu.memory_space<vmem>>, %arg8: memref<1x1x8x8xbf16, #tpu.memory_space<vmem>>, %arg9: memref<1x1x8x8xbf16, #tpu.memory_space<vmem>>) attributes {dimension_semantics = [#tpu.dimension_semantics<parallel>, #tpu.dimension_semantics<parallel>, #tpu.dimension_semantics<parallel>], iteration_bounds = array<i64: 2, 1, 4>, scalar_prefetch = 0 : i64, scratch_operands = 0 : i64, tpu.core_type = #tpu.core_type<tc>, window_params = [{transform_indices = @transform_0, window_bounds = array<i64: 1, 8, 32>}, {transform_indices = @transform_1, window_bounds = array<i64: 8, 4>}, {transform_indices = @transform_2, window_bounds = array<i64: 8, 4>}, {transform_indices = @transform_3, window_bounds = array<i64: 1, 32, 24>}, {transform_indices = @transform_4, window_bounds = array<i64: 1, 1, 8, 8>}, {transform_indices = @transform_5, window_bounds = array<i64: 1, 1, 8, 8>}, {transform_indices = @transform_6, window_bounds = array<i64: 1, 1, 8, 8>}]} {
    %c0 = arith.constant 0 : index
    %c0_0 = arith.constant 0 : index
    %c0_1 = arith.constant 0 : index
    %0 = vector.load %arg3[%c0, %c0_0, %c0_1] : memref<1x8x32xbf16, #tpu.memory_space<vmem>>, vector<1x8x32xbf16>
    %1 = vector.shape_cast %0 : vector<1x8x32xbf16> to vector<8x32xbf16>
    %c0_2 = arith.constant 0 : index
    %c0_3 = arith.constant 0 : index
    %c0_4 = arith.constant 0 : index
    %2 = vector.load %arg6[%c0_2, %c0_3, %c0_4] : memref<1x32x24xbf16, #tpu.memory_space<vmem>>, vector<1x32x24xbf16>
    %3 = vector.shape_cast %2 : vector<1x32x24xbf16> to vector<32x24xbf16>
    %cst = arith.constant dense<0.000000e+00> : vector<8x24xf32>
    %4 = tpu.matmul %1, %3, %cst {dimension_numbers = #tpu.dot_dimension_numbers<[1], [0], [0], [1], [0, 0, 1, 1], [], []>} : vector<8x32xbf16>, vector<32x24xbf16>, vector<8x24xf32> -> vector<8x24xf32>
    %c0_5 = arith.constant 0 : index
    %c0_6 = arith.constant 0 : index
    %5 = vector.load %arg4[%c0_5, %c0_6] : memref<8x4xf32, #tpu.memory_space<vmem>>, vector<8x4xf32>
    %c0_7 = arith.constant 0 : index
    %c0_8 = arith.constant 0 : index
    %6 = vector.load %arg5[%c0_7, %c0_8] : memref<8x4xf32, #tpu.memory_space<vmem>>, vector<8x4xf32>
    %7 = vector.extract_strided_slice %4 {offsets = [0, 0], sizes = [8, 8], strides = [1, 1]} : vector<8x24xf32> to vector<8x8xf32>
    %8 = vector.extract_strided_slice %7 {offsets = [0, 0], sizes = [8, 4], strides = [1, 1]} : vector<8x8xf32> to vector<8x4xf32>
    %9 = vector.extract_strided_slice %7 {offsets = [0, 4], sizes = [8, 4], strides = [1, 1]} : vector<8x8xf32> to vector<8x4xf32>
    %10 = arith.mulf %8, %5 : vector<8x4xf32>
    %11 = arith.mulf %9, %6 : vector<8x4xf32>
    %12 = arith.subf %10, %11 : vector<8x4xf32>
    %13 = arith.mulf %9, %5 : vector<8x4xf32>
    %14 = arith.mulf %8, %6 : vector<8x4xf32>
    %15 = arith.addf %13, %14 : vector<8x4xf32>
    %16 = tpu.concatenate %12, %15 in 1 : vector<8x4xf32>, vector<8x4xf32> -> vector<8x8xf32>
    %17 = arith.truncf %16 : vector<8x8xf32> to vector<8x8xbf16>
    %c0_9 = arith.constant 0 : index
    %c0_10 = arith.constant 0 : index
    %c0_11 = arith.constant 0 : index
    %c0_12 = arith.constant 0 : index
    %18 = vector.load %arg7[%c0_9, %c0_10, %c0_11, %c0_12] : memref<1x1x8x8xbf16, #tpu.memory_space<vmem>>, vector<1x1x8x8xbf16>
    %19 = vector.shape_cast %18 : vector<1x1x8x8xbf16> to vector<8x8xbf16>
    %20 = vector.shape_cast %17 : vector<8x8xbf16> to vector<1x1x8x8xbf16>
    tpu.vector_store %arg7[%c0_9, %c0_10, %c0_11, %c0_12], %20 {strides = array<i32>} : memref<1x1x8x8xbf16, #tpu.memory_space<vmem>>, vector<1x1x8x8xbf16>,
    %21 = vector.extract_strided_slice %4 {offsets = [0, 8], sizes = [8, 8], strides = [1, 1]} : vector<8x24xf32> to vector<8x8xf32>
    %22 = vector.extract_strided_slice %21 {offsets = [0, 0], sizes = [8, 4], strides = [1, 1]} : vector<8x8xf32> to vector<8x4xf32>
    %23 = vector.extract_strided_slice %21 {offsets = [0, 4], sizes = [8, 4], strides = [1, 1]} : vector<8x8xf32> to vector<8x4xf32>
    %24 = arith.mulf %22, %5 : vector<8x4xf32>
    %25 = arith.mulf %23, %6 : vector<8x4xf32>
    %26 = arith.subf %24, %25 : vector<8x4xf32>
    %27 = arith.mulf %23, %5 : vector<8x4xf32>
    %28 = arith.mulf %22, %6 : vector<8x4xf32>
    %29 = arith.addf %27, %28 : vector<8x4xf32>
    %30 = tpu.concatenate %26, %29 in 1 : vector<8x4xf32>, vector<8x4xf32> -> vector<8x8xf32>
    %31 = arith.truncf %30 : vector<8x8xf32> to vector<8x8xbf16>
    %c0_13 = arith.constant 0 : index
    %c0_14 = arith.constant 0 : index
    %c0_15 = arith.constant 0 : index
    %c0_16 = arith.constant 0 : index
    %32 = vector.load %arg8[%c0_13, %c0_14, %c0_15, %c0_16] : memref<1x1x8x8xbf16, #tpu.memory_space<vmem>>, vector<1x1x8x8xbf16>
    %33 = vector.shape_cast %32 : vector<1x1x8x8xbf16> to vector<8x8xbf16>
    %34 = vector.shape_cast %31 : vector<8x8xbf16> to vector<1x1x8x8xbf16>
    tpu.vector_store %arg8[%c0_13, %c0_14, %c0_15, %c0_16], %34 {strides = array<i32>} : memref<1x1x8x8xbf16, #tpu.memory_space<vmem>>, vector<1x1x8x8xbf16>,
    %35 = vector.extract_strided_slice %4 {offsets = [0, 16], sizes = [8, 8], strides = [1, 1]} : vector<8x24xf32> to vector<8x8xf32>
    %36 = arith.truncf %35 : vector<8x8xf32> to vector<8x8xbf16>
    %c0_17 = arith.constant 0 : index
    %c0_18 = arith.constant 0 : index
    %c0_19 = arith.constant 0 : index
    %c0_20 = arith.constant 0 : index
    %37 = vector.load %arg9[%c0_17, %c0_18, %c0_19, %c0_20] : memref<1x1x8x8xbf16, #tpu.memory_space<vmem>>, vector<1x1x8x8xbf16>
    %38 = vector.shape_cast %37 : vector<1x1x8x8xbf16> to vector<8x8xbf16>
    %39 = vector.shape_cast %36 : vector<8x8xbf16> to vector<1x1x8x8xbf16>
    tpu.vector_store %arg9[%c0_17, %c0_18, %c0_19, %c0_20], %39 {strides = array<i32>} : memref<1x1x8x8xbf16, #tpu.memory_space<vmem>>, vector<1x1x8x8xbf16>,
    return
  }
  func.func @transform_0(%arg0: i32, %arg1: i32, %arg2: i32) -> (i32, i32, i32) {
    %c0_i32 = arith.constant 0 : i32
    %c0_i32_0 = arith.constant 0 : i32
    return %arg0, %arg1, %c0_i32 : i32, i32, i32
  }
  func.func @transform_1(%arg0: i32, %arg1: i32, %arg2: i32) -> (i32, i32) {
    %c0_i32 = arith.constant 0 : i32
    %c0_i32_0 = arith.constant 0 : i32
    return %arg1, %c0_i32 : i32, i32
  }
  func.func @transform_2(%arg0: i32, %arg1: i32, %arg2: i32) -> (i32, i32) {
    %c0_i32 = arith.constant 0 : i32
    %c0_i32_0 = arith.constant 0 : i32
    return %arg1, %c0_i32 : i32, i32
  }
  func.func @transform_3(%arg0: i32, %arg1: i32, %arg2: i32) -> (i32, i32, i32) {
    %c0_i32 = arith.constant 0 : i32
    %c0_i32_0 = arith.constant 0 : i32
    %c0_i32_1 = arith.constant 0 : i32
    return %arg2, %c0_i32, %c0_i32_0 : i32, i32, i32
  }
  func.func @transform_4(%arg0: i32, %arg1: i32, %arg2: i32) -> (i32, i32, i32, i32) {
    %c0_i32 = arith.constant 0 : i32
    %c0_i32_0 = arith.constant 0 : i32
    return %arg0, %arg2, %arg1, %c0_i32 : i32, i32, i32, i32
  }
  func.func @transform_5(%arg0: i32, %arg1: i32, %arg2: i32) -> (i32, i32, i32, i32) {
    %c0_i32 = arith.constant 0 : i32
    %c0_i32_0 = arith.constant 0 : i32
    return %arg0, %arg2, %arg1, %c0_i32 : i32, i32, i32, i32
  }
  func.func @transform_6(%arg0: i32, %arg1: i32, %arg2: i32) -> (i32, i32, i32, i32) {
    %c0_i32 = arith.constant 0 : i32
    %c0_i32_0 = arith.constant 0 : i32
    return %arg0, %arg2, %arg1, %c0_i32 : i32, i32, i32, i32
  }
}

</mosaic_0001>

<llo_original>
// kernel: tpu_custom_call.1
$region0: #{tpu_custom_call.1}
  #allocation0 [shape = 'u32[]', space=smem, size = 0x4, offset = 0x4, fixed_abs, tag = 'smem constant byte address 0x4 - core index']
  #allocation1 [shape = 'u32[72,128]{1,0:T(1,128)}', space=vmem, size = 0x9000, scoped, tag = 'internal scratch']
  %s0 = inlined_call_operand.vmem [shape: bf16[2,8,32], index: 0, kind: input, shape index: {}]
  %s1 = inlined_call_operand.vmem [shape: f32[8,4], index: 1, kind: input, shape index: {}]
  %s2 = inlined_call_operand.vmem [shape: f32[8,4], index: 2, kind: input, shape index: {}]
  %s3 = inlined_call_operand.vmem [shape: bf16[4,32,24], index: 3, kind: input, shape index: {}]
  %s4 = inlined_call_operand.hbm [shape: bf16[2,4,8,8], index: 4, kind: output, shape index: {0}]
  %s5 = inlined_call_operand.hbm [shape: bf16[2,4,8,8], index: 5, kind: output, shape index: {1}]
  %s6 = inlined_call_operand.hbm [shape: bf16[2,4,8,8], index: 6, kind: output, shape index: {2}]
  %7 = xla_tuple %s4, %s5, %s6
  %s8 = sld [smem:[#allocation0]]
  $region65: #{tpu_custom_call.1} parent=0
    _
  %s10 = ssub.s32 1, %s8
  %s11 = scalar_select 0, %s10, %s8
  $region1: #{tpu_custom_call.1} parent=0
    #allocation2 [shape = 'u8[4096]{0}', space=vmem, size = 0x1000, scoped, tag = 'output window, operand 0']
    #allocation3 [shape = 's32[2]{0}', space=sflag, size = 0x8, scoped, tag = 'scoped memory for tpu_custom_call.1']
    #allocation4 [shape = 'u8[4096]{0}', space=vmem, size = 0x1000, scoped, tag = 'output window, operand 1']
    #allocation5 [shape = 's32[2]{0}', space=sflag, size = 0x8, scoped, tag = 'scoped memory for tpu_custom_call.1']
    #allocation6 [shape = 'u8[4096]{0}', space=vmem, size = 0x1000, scoped, tag = 'output window, operand 2']
    %12 = vsyncpa [#allocation3], 0
    %s13 = scalar_lea.sflag [#allocation3], 1
    %14 = vsyncpa %s13, 0
    %15 = vsyncpa [#allocation5], 0
    %s16 = scalar_lea.sflag [#allocation5], 1
    %17 = vsyncpa %s16, 0
    loop: start=0, step=1, limit=10
    $region2: #{tpu_custom_call.1} parent=1 // loop_pre_header
      _
    $region3: #{tpu_custom_call.1} parent=1 // loop_header
      %s19 = sphi 0, %s23
      %p20 = scmp.ge.s32.totalorder %s19, 10
      %s26 = sphi 0, %s45
      %s27 = sphi 0, %s41
      %s28 = sphi 0, %s37
      %s29 = sphi 0, %s26
      %s30 = sphi 0, %s27
      %s31 = sphi 0, %s28
      %s32 = sphi 0, %s29
      %s33 = sphi 0, %s30
      %s34 = sphi 0, %s31
      %s50 = sphi 0, %s52
      %s53 = sphi 0, %s50
      %s54 = sphi 0, %s53
      %s70 = sphi 0, %s54
      %s76 = sphi 0, %s78
      %s79 = sphi 0, %s76
      %s80 = sphi 0, %s79
      %s96 = sphi 0, %s80
      %s102 = sphi 0, %s104
      %s105 = sphi 0, %s102
      %s106 = sphi 0, %s105
      %s122 = sphi 0, %s106
      %s128 = sphi 0, %s130
      %s131 = sphi 0, %s128
      %s132 = sphi 0, %s131
      %s148 = sphi 0, %s132
      %s158 = sphi 0, %s160
      %s161 = sphi 0, %s158
      %s162 = sphi 0, %s161
      %s178 = sphi 0, %s162
      %s188 = sphi 0, %s190
      %s191 = sphi 0, %s188
      %s192 = sphi 0, %s191
      %s208 = sphi 0, %s192
      %s218 = sphi 0, %s220
      %s221 = sphi 0, %s218
      %s222 = sphi 0, %s221
      %s238 = sphi 0, %s222
    $region4: #{tpu_custom_call.1} parent=1 // loop_header_branch
      %22 = sbr.rel (%p20) target = $region8
    $region5: #{tpu_custom_call.1} parent=1 // loop_body
      %s24 = ssub.s32 %s19, 1
      %s25 = ssub.s32 %s19, 2
      %s35 = sadd.s32 1, %s28
      %p36 = scmp.ge.s32.totalorder %s35, 4
      %s37 = scalar_select %p36, 0, %s35
      %s38 = sadd.s32 1, %s27
      %s39 = scalar_select %p36, %s38, %s27
      %p40 = scmp.ge.s32.totalorder %s39, 1
      %s41 = scalar_select %p40, 0, %s39
      %s42 = sadd.s32 1, %s26
      %s43 = scalar_select %p40, %s42, %s26
      %p44 = scmp.ge.s32.totalorder %s43, 2
      %s45 = scalar_select %p44, 0, %s43
      %s46 = ssub.s32 %s26, %s45
      %s47 = ssub.s32 %s27, %s41
      %s48 = sor.u32 %s46, %s47
      %p49 = scmp.eq.s32.totalorder %s48, 0
      %s51 = sadd.s32 %s50, 1
      %s52 = scalar_select %p49, %s50, %s51
      %p55 = pneg %p49
      %p56 = scmp.eq.s32.totalorder %s19, 7
      %p57 = por %p55, %p56
      %p58 = scmp.ne.s32.totalorder %s50, %s53
      %p59 = scmp.eq.s32.totalorder %s19, 0
      %p60 = por %p58, %p59
      %p61 = scmp.ne.s32.totalorder %s50, %s53
      %p62 = scmp.eq.s32.totalorder %s24, 7
      %p63 = por %p61, %p62
      %p64 = scmp.ne.s32.totalorder %s53, %s54
      %p65 = scmp.eq.s32.totalorder %s24, 0
      %p66 = por %p64, %p65
      %p67 = scmp.ne.s32.totalorder %s53, %s54
      %p68 = scmp.eq.s32.totalorder %s25, 7
      %p69 = por %p67, %p68
      %p71 = scmp.ne.s32.totalorder %s54, %s70
      %p72 = scmp.eq.s32.totalorder %s25, 0
      %p73 = por %p71, %p72
      %s74 = ssub.s32 %s27, %s41
      %p75 = scmp.eq.s32.totalorder %s74, 0
      %s77 = sadd.s32 %s76, 1
      %s78 = scalar_select %p75, %s76, %s77
      %p81 = pneg %p75
      %p82 = scmp.eq.s32.totalorder %s19, 7
      %p83 = por %p81, %p82
      %p84 = scmp.ne.s32.totalorder %s76, %s79
      %p85 = scmp.eq.s32.totalorder %s19, 0
      %p86 = por %p84, %p85
      %p87 = scmp.ne.s32.totalorder %s76, %s79
      %p88 = scmp.eq.s32.totalorder %s24, 7
      %p89 = por %p87, %p88
      %p90 = scmp.ne.s32.totalorder %s79, %s80
      %p91 = scmp.eq.s32.totalorder %s24, 0
      %p92 = por %p90, %p91
      %p93 = scmp.ne.s32.totalorder %s79, %s80
      %p94 = scmp.eq.s32.totalorder %s25, 7
      %p95 = por %p93, %p94
      %p97 = scmp.ne.s32.totalorder %s80, %s96
      %p98 = scmp.eq.s32.totalorder %s25, 0
      %p99 = por %p97, %p98
      %s100 = ssub.s32 %s27, %s41
      %p101 = scmp.eq.s32.totalorder %s100, 0
      %s103 = sadd.s32 %s102, 1
      %s104 = scalar_select %p101, %s102, %s103
      %p107 = pneg %p101
      %p108 = scmp.eq.s32.totalorder %s19, 7
      %p109 = por %p107, %p108
      %p110 = scmp.ne.s32.totalorder %s102, %s105
      %p111 = scmp.eq.s32.totalorder %s19, 0
      %p112 = por %p110, %p111
      %p113 = scmp.ne.s32.totalorder %s102, %s105
      %p114 = scmp.eq.s32.totalorder %s24, 7
      %p115 = por %p113, %p114
      %p116 = scmp.ne.s32.totalorder %s105, %s106
      %p117 = scmp.eq.s32.totalorder %s24, 0
      %p118 = por %p116, %p117
      %p119 = scmp.ne.s32.totalorder %s105, %s106
      %p120 = scmp.eq.s32.totalorder %s25, 7
      %p121 = por %p119, %p120
      %p123 = scmp.ne.s32.totalorder %s106, %s122
      %p124 = scmp.eq.s32.totalorder %s25, 0
      %p125 = por %p123, %p124
      %s126 = ssub.s32 %s28, %s37
      %p127 = scmp.eq.s32.totalorder %s126, 0
      %s129 = sadd.s32 %s128, 1
      %s130 = scalar_select %p127, %s128, %s129
      %p133 = pneg %p127
      %p134 = scmp.eq.s32.totalorder %s19, 7
      %p135 = por %p133, %p134
      %p136 = scmp.ne.s32.totalorder %s128, %s131
      %p137 = scmp.eq.s32.totalorder %s19, 0
      %p138 = por %p136, %p137
      %p139 = scmp.ne.s32.totalorder %s128, %s131
      %p140 = scmp.eq.s32.totalorder %s24, 7
      %p141 = por %p139, %p140
      %p142 = scmp.ne.s32.totalorder %s131, %s132
      %p143 = scmp.eq.s32.totalorder %s24, 0
      %p144 = por %p142, %p143
      %p145 = scmp.ne.s32.totalorder %s131, %s132
      %p146 = scmp.eq.s32.totalorder %s25, 7
      %p147 = por %p145, %p146
      %p149 = scmp.ne.s32.totalorder %s132, %s148
      %p150 = scmp.eq.s32.totalorder %s25, 0
      %p151 = por %p149, %p150
      %s152 = ssub.s32 %s26, %s45
      %s153 = ssub.s32 %s28, %s37
      %s154 = sor.u32 %s152, %s153
      %s155 = ssub.s32 %s27, %s41
      %s156 = sor.u32 %s154, %s155
      %p157 = scmp.eq.s32.totalorder %s156, 0
      %s159 = sadd.s32 %s158, 1
      %s160 = scalar_select %p157, %s158, %s159
      %p163 = pneg %p157
      %p164 = scmp.eq.s32.totalorder %s19, 7
      %p165 = por %p163, %p164
      %p166 = scmp.ne.s32.totalorder %s158, %s161
      %p167 = scmp.eq.s32.totalorder %s19, 0
      %p168 = por %p166, %p167
      %p169 = scmp.ne.s32.totalorder %s158, %s161
      %p170 = scmp.eq.s32.totalorder %s24, 7
      %p171 = por %p169, %p170
      %p172 = scmp.ne.s32.totalorder %s161, %s162
      %p173 = scmp.eq.s32.totalorder %s24, 0
      %p174 = por %p172, %p173
      %p175 = scmp.ne.s32.totalorder %s161, %s162
      %p176 = scmp.eq.s32.totalorder %s25, 7
      %p177 = por %p175, %p176
      %p179 = scmp.ne.s32.totalorder %s162, %s178
      %p180 = scmp.eq.s32.totalorder %s25, 0
      %p181 = por %p179, %p180
      %s182 = ssub.s32 %s26, %s45
      %s183 = ssub.s32 %s28, %s37
      %s184 = sor.u32 %s182, %s183
      %s185 = ssub.s32 %s27, %s41
      %s186 = sor.u32 %s184, %s185
      %p187 = scmp.eq.s32.totalorder %s186, 0
      %s189 = sadd.s32 %s188, 1
      %s190 = scalar_select %p187, %s188, %s189
      %p193 = pneg %p187
      %p194 = scmp.eq.s32.totalorder %s19, 7
      %p195 = por %p193, %p194
      %p196 = scmp.ne.s32.totalorder %s188, %s191
      %p197 = scmp.eq.s32.totalorder %s19, 0
      %p198 = por %p196, %p197
      %p199 = scmp.ne.s32.totalorder %s188, %s191
      %p200 = scmp.eq.s32.totalorder %s24, 7
      %p201 = por %p199, %p200
      %p202 = scmp.ne.s32.totalorder %s191, %s192
      %p203 = scmp.eq.s32.totalorder %s24, 0
      %p204 = por %p202, %p203
      %p205 = scmp.ne.s32.totalorder %s191, %s192
      %p206 = scmp.eq.s32.totalorder %s25, 7
      %p207 = por %p205, %p206
      %p209 = scmp.ne.s32.totalorder %s192, %s208
      %p210 = scmp.eq.s32.totalorder %s25, 0
      %p211 = por %p209, %p210
      %s212 = ssub.s32 %s26, %s45
      %s213 = ssub.s32 %s28, %s37
      %s214 = sor.u32 %s212, %s213
      %s215 = ssub.s32 %s27, %s41
      %s216 = sor.u32 %s214, %s215
      %p217 = scmp.eq.s32.totalorder %s216, 0
      %s219 = sadd.s32 %s218, 1
      %s220 = scalar_select %p217, %s218, %s219
      %p223 = pneg %p217
      %p224 = scmp.eq.s32.totalorder %s19, 7
      %p225 = por %p223, %p224
      %p226 = scmp.ne.s32.totalorder %s218, %s221
      %p227 = scmp.eq.s32.totalorder %s19, 0
      %p228 = por %p226, %p227
      %p229 = scmp.ne.s32.totalorder %s218, %s221
      %p230 = scmp.eq.s32.totalorder %s24, 7
      %p231 = por %p229, %p230
      %p232 = scmp.ne.s32.totalorder %s221, %s222
      %p233 = scmp.eq.s32.totalorder %s24, 0
      %p234 = por %p232, %p233
      %p235 = scmp.ne.s32.totalorder %s221, %s222
      %p236 = scmp.eq.s32.totalorder %s25, 7
      %p237 = por %p235, %p236
      %p239 = scmp.ne.s32.totalorder %s222, %s238
      %p240 = scmp.eq.s32.totalorder %s25, 0
      %p241 = por %p239, %p240
      %p242 = scmp.le.s32.totalorder 1, %s19
      %p243 = scmp.lt.s32.totalorder %s19, 9
      %p244 = pnand %p242, %p243
      %p245 = pneg %p244
      // Predicated region
      $region9: #{tpu_custom_call.1} parent=5 // pred_check
        _
      $region10: #{tpu_custom_call.1} parent=5 // pred_check_branch
        %247 = sbr.rel (%p244) target = $region12
      $region11: #{tpu_custom_call.1} parent=5 // pred_region
        %s248 = ssub.s32 %s19, 1
        // Predicated region
        $region13: #{tpu_custom_call.1} parent=11 // pred_check
          %p249 = pneg %p92
        $region14: #{tpu_custom_call.1} parent=11 // pred_check_branch
          %251 = sbr.rel (%p249) target = $region16
        $region15: #{tpu_custom_call.1} parent=11 // pred_region
          %p252 = scmp.lt.s32.totalorder %s30, 0
          %s253 = scalar_select %p252, %s30, 0
          %s254 = smul.addr %s253, 8
          %s255 = scalar_lea.vmem %s1, %s254
        $region16: #{tpu_custom_call.1} parent=11 // pred_fallthru
          _
        // Predicated region
        $region17: #{tpu_custom_call.1} parent=11 // pred_check
          %p256 = pneg %p118
        $region18: #{tpu_custom_call.1} parent=11 // pred_check_branch
          %258 = sbr.rel (%p256) target = $region20
        $region19: #{tpu_custom_call.1} parent=11 // pred_region
          %p259 = scmp.lt.s32.totalorder %s30, 0
          %s260 = scalar_select %p259, %s30, 0
          %s261 = smul.addr %s260, 8
          %s262 = scalar_lea.vmem %s2, %s261
        $region20: #{tpu_custom_call.1} parent=11 // pred_fallthru
          _
      $region12: #{tpu_custom_call.1} parent=5 // pred_fallthru
        _
      %p263 = scmp.lt.s32.totalorder %s19, 8
      // Predicated region
      $region21: #{tpu_custom_call.1} parent=5 // pred_check
        %p264 = pneg %p263
      $region22: #{tpu_custom_call.1} parent=5 // pred_check_branch
        %266 = sbr.rel (%p264) target = $region24
      $region23: #{tpu_custom_call.1} parent=5 // pred_region
        // Predicated region
        $region25: #{tpu_custom_call.1} parent=23 // pred_check
          %p267 = pneg %p60
        $region26: #{tpu_custom_call.1} parent=23 // pred_check_branch
          %269 = sbr.rel (%p267) target = $region28
        $region27: #{tpu_custom_call.1} parent=23 // pred_region
          %p270 = scmp.lt.s32.totalorder %s26, 1
          %s271 = scalar_select %p270, %s26, 1
          %p272 = scmp.lt.s32.totalorder %s27, 0
          %s273 = scalar_select %p272, %s27, 0
          %s274 = sadd.s32 %s273, %s271
          %s275 = smul.addr %s274, 4
          %s276 = scalar_lea.vmem %s0, %s275
        $region28: #{tpu_custom_call.1} parent=23 // pred_fallthru
          _
        // Predicated region
        $region29: #{tpu_custom_call.1} parent=23 // pred_check
          %p277 = pneg %p138
        $region30: #{tpu_custom_call.1} parent=23 // pred_check_branch
          %279 = sbr.rel (%p277) target = $region32
        $region31: #{tpu_custom_call.1} parent=23 // pred_region
          %p280 = scmp.lt.s32.totalorder %s28, 3
          %s281 = scalar_select %p280, %s28, 3
          %s282 = smul.addr %s281, 4
          %s283 = smul.addr %s282, 4
          %s284 = scalar_lea.vmem %s3, %s283
        $region32: #{tpu_custom_call.1} parent=23 // pred_fallthru
          _
      $region24: #{tpu_custom_call.1} parent=5 // pred_fallthru
        _
      %p285 = scmp.le.s32.totalorder 1, %s19
      %p286 = scmp.lt.s32.totalorder %s19, 9
      %p287 = pnand %p285, %p286
      %p288 = pneg %p287
      // Predicated region
      $region33: #{tpu_custom_call.1} parent=5 // pred_check
        _
      $region34: #{tpu_custom_call.1} parent=5 // pred_check_branch
        %290 = sbr.rel (%p287) target = $region36
      $region35: #{tpu_custom_call.1} parent=5 // pred_region
        %s291 = ssub.s32 %s19, 1
        %p292 = scmp.lt.s32.totalorder %s29, 1
        %s293 = scalar_select %p292, %s29, 1
        %p294 = scmp.lt.s32.totalorder %s30, 0
        %s295 = scalar_select %p294, %s30, 0
        %s296 = sadd.s32 %s295, %s293
        %s297 = smul.addr %s296, 4
        %s298 = scalar_lea.vmem %s0, %s297
        %p299 = pneg %p66
        %p300 = pneg %p63
        %p301 = scmp.lt.s32.totalorder %s30, 0
        %s302 = scalar_select %p301, %s30, 0
        %s303 = smul.addr %s302, 8
        %s304 = scalar_lea.vmem %s1, %s303
        %p305 = pneg %p92
        %p306 = pneg %p89
        %p307 = scmp.lt.s32.totalorder %s30, 0
        %s308 = scalar_select %p307, %s30, 0
        %s309 = smul.addr %s308, 8
        %s310 = scalar_lea.vmem %s2, %s309
        %p311 = pneg %p118
        %p312 = pneg %p115
        %p313 = scmp.lt.s32.totalorder %s31, 3
        %s314 = scalar_select %p313, %s31, 3
        %s315 = smul.addr %s314, 4
        %s316 = smul.addr %s315, 4
        %s317 = scalar_lea.vmem %s3, %s316
        %p318 = pneg %p144
        %p319 = pneg %p141
        %p320 = pneg %p174
        %p321 = pneg %p171
        %s322 = sand.u32 %s161, 1
        %s323 = scalar_lea.sflag [#allocation3], %s322
        %s324 = sand.u32 %s161, 1
        %s325 = smul.addr %s324, 4
        %s326 = scalar_lea.vmem [#allocation2], %s325
        %p327 = pneg %p204
        %p328 = pneg %p201
        %s329 = sand.u32 %s24, 1
        %s330 = scalar_lea.sflag [#allocation5], %s329
        %s331 = sand.u32 %s191, 1
        %s332 = smul.addr %s331, 4
        %s333 = scalar_lea.vmem [#allocation4], %s332
        %p334 = pneg %p234
        %p335 = pneg %p231
        %s336 = sand.u32 %s24, 1
        %s337 = scalar_lea.sflag [#allocation5], %s336
        %s338 = sand.u32 %s221, 1
        %s339 = smul.addr %s338, 4
        %s340 = scalar_lea.vmem [#allocation6], %s339
        %p341 = scmp.lt.s32.totalorder %s29, 1
        %s342 = scalar_select %p341, %s29, 1
        %p343 = scmp.lt.s32.totalorder %s30, 0
        %s344 = scalar_select %p343, %s30, 0
        %s345 = sadd.s32 %s344, %s342
        %s346 = smul.addr %s345, 4
        %s347 = scalar_lea.vmem %s0, %s346
        %p348 = scmp.lt.s32.totalorder %s30, 0
        %s349 = scalar_select %p348, %s30, 0
        %s350 = smul.addr %s349, 8
        %s351 = scalar_lea.vmem %s1, %s350
        %p352 = scmp.lt.s32.totalorder %s30, 0
        %s353 = scalar_select %p352, %s30, 0
        %s354 = smul.addr %s353, 8
        %s355 = scalar_lea.vmem %s2, %s354
        %p356 = scmp.lt.s32.totalorder %s31, 3
        %s357 = scalar_select %p356, %s31, 3
        %s358 = smul.addr %s357, 4
        %s359 = smul.addr %s358, 4
        %s360 = scalar_lea.vmem %s3, %s359
        %v362 = vld [vmem:[%s347] sm:$0xf]
        %v363 = vld [vmem:[%s360] sm:$0xf]
        %v364 = vld [vmem:[%s360 + $0x4] sm:$0xf]
        %v365 = vld [vmem:[%s360 + $0x8] sm:$0xf]
        %v366 = vld [vmem:[%s360 + $0xc] sm:$0xf]
        %v371 = vunpack.c.l.b16 %v363
        %v372 = vunpack.c.l.b16 %v364
        %v373 = vunpack.c.l.b16 %v365
        %v374 = vunpack.c.l.b16 %v366
        %v375 = vpack.c.b16 %v372, %v371
        %v376 = vpack.c.b16 %v374, %v373
        %vm379 = vcmask 261120
        %v381 = vsel %vm379, %v362, 0
        %383 = vmatpush.bf16.msra.mxu0 0
        %384 = vmatpush.bf16.msra.mxu0 0
        %385 = vmatpush.bf16.msra.mxu0 0
        %386 = vmatpush.bf16.msra.mxu0 0
        %387 = vmatpush.bf16.msra.mxu0 0
        %388 = vmatpush.bf16.msra.mxu0 0
        %389 = vmatpush.bf16.msra.mxu0 %v376
        %390 = vmatpush.bf16.msra.mxu0 %v375
        %391 = vmatmul.bf16.gmra.mxu0 %v381
        %v392 = vpop.f32.mrf.mxu0
        %v393 = vadd.f32 0.0, %v392
        %v394 = vpop.f32.mrf.mxu0
        %395 = vdwg.mxu0
        %v396 = vld [vmem:[%s351] sm:$0xff]
        %v397 = vld [vmem:[%s355] sm:$0xff]
        %v398 = vmul.f32 %v393, %v396
        %400 = vrot.lane.b32.xlu0 %v397, 4
        %v401 = vpop.permute.xlu0 %400
        %v403 = vmul.f32 %v393, %v401
        %405 = vrot.lane.b32.xlu0 %v403, 124
        %v406 = vpop.permute.xlu0 %405
        %v408 = vsub.f32 %v398, %v406
        %410 = vrot.lane.b32.xlu0 %v396, 4
        %v411 = vpop.permute.xlu0 %410
        %v413 = vmul.f32 %v393, %v411
        %v414 = vmul.f32 %v393, %v397
        %416 = vrot.lane.b32.xlu0 %v414, 4
        %v417 = vpop.permute.xlu0 %416
        %v419 = vadd.f32 %v413, %v417
        %vm420 = vcmask 31744
        %v421 = vsel %vm420, %v408, %v419
        %v422 = vpack.c.bf16 %v421, %v421
        %vm423 = vcmask 60416
        %424 = vst.msk [vmem:[%s326] sm:$0xf] %vm423, %v422
        %425 = vrot.lane.b32.xlu0 %v396, 8
        %v426 = vpop.permute.xlu0 %425
        %v428 = vmul.f32 %v393, %v426
        %429 = vrot.lane.b32.xlu0 %v397, 12
        %v430 = vpop.permute.xlu0 %429
        %v432 = vmul.f32 %v393, %v430
        %434 = vrot.lane.b32.xlu0 %v432, 124
        %v435 = vpop.permute.xlu0 %434
        %v437 = vsub.f32 %v428, %v435
        %438 = vrot.lane.b32.xlu0 %v396, 12
        %v439 = vpop.permute.xlu0 %438
        %v441 = vmul.f32 %v393, %v439
        %442 = vrot.lane.b32.xlu0 %v397, 8
        %v443 = vpop.permute.xlu0 %442
        %v445 = vmul.f32 %v393, %v443
        %447 = vrot.lane.b32.xlu0 %v445, 4
        %v448 = vpop.permute.xlu0 %447
        %v450 = vadd.f32 %v441, %v448
        %452 = vrot.lane.b32.xlu0 %v437, 120
        %v453 = vpop.permute.xlu0 %452
        %456 = vrot.lane.b32.xlu0 %v450, 120
        %v457 = vpop.permute.xlu0 %456
        %v459 = vsel %vm420, %v453, %v457
        %v460 = vpack.c.bf16 %v459, %v459
        %461 = vst.msk [vmem:[%s333] sm:$0xf] %vm423, %v460
        %v462 = vpack.c.bf16 %v393, %v393
        %464 = vrot.lane.b32.xlu0 %v462, 112
        %v465 = vpop.permute.xlu0 %464
        %467 = vst.msk [vmem:[%s340] sm:$0xf] %vm423, %v465
        %s468 = sand.u32 %s161, 1
        %s469 = scalar_lea.sflag [#allocation3], %s468
        %s470 = sand.u32 %s161, 1
        %s471 = smul.addr %s470, 4
        %s472 = scalar_lea.vmem [#allocation2], %s471
        %s473 = sand.u32 %s24, 1
        %s474 = scalar_lea.sflag [#allocation5], %s473
        %s475 = sand.u32 %s191, 1
        %s476 = smul.addr %s475, 4
        %s477 = scalar_lea.vmem [#allocation4], %s476
        %s478 = sand.u32 %s24, 1
        %s479 = scalar_lea.sflag [#allocation5], %s478
        %s480 = sand.u32 %s221, 1
        %s481 = smul.addr %s480, 4
        %s482 = scalar_lea.vmem [#allocation6], %s481
        // Predicated region
        $region37: #{tpu_custom_call.1} parent=35 // pred_check
          %p483 = pneg %p171
        $region38: #{tpu_custom_call.1} parent=35 // pred_check_branch
          %485 = sbr.rel (%p483) target = $region40
        $region39: #{tpu_custom_call.1} parent=35 // pred_region
          %487 = vsyncadd %s469, 0
          %s488 = sadd.s32 %s30, %s31
          %s489 = smul.addr %s29, 4
          %s490 = sadd.s32 %s488, %s489
          %s491 = smul.addr %s490, 4
          %s492 = scalar_lea.hbm %s4, %s491
          %s494 = sshll.u32 %s472, 4
          %s495 = int_to_ptr.vmem [resolvable:$true] %s494
          %s496 = sshll.u32 %s492, 4
          %s497 = int_to_ptr.hbm [resolvable:$true] %s496
          %499 = dma.vmem_to_hbm [thread:$0]  %s495, 64, %s497, %s469
        $region40: #{tpu_custom_call.1} parent=35 // pred_fallthru
          _
        // Predicated region
        $region41: #{tpu_custom_call.1} parent=35 // pred_check
          %p500 = pneg %p201
        $region42: #{tpu_custom_call.1} parent=35 // pred_check_branch
          %502 = sbr.rel (%p500) target = $region44
        $region43: #{tpu_custom_call.1} parent=35 // pred_region
          %504 = vsyncadd %s474, 0
          %s505 = sadd.s32 %s30, %s31
          %s506 = smul.addr %s29, 4
          %s507 = sadd.s32 %s505, %s506
          %s508 = smul.addr %s507, 4
          %s509 = scalar_lea.hbm %s5, %s508
          %s511 = sshll.u32 %s477, 4
          %s512 = int_to_ptr.vmem [resolvable:$true] %s511
          %s513 = sshll.u32 %s509, 4
          %s514 = int_to_ptr.hbm [resolvable:$true] %s513
          %516 = dma.vmem_to_hbm [thread:$0]  %s512, 64, %s514, %s474
        $region44: #{tpu_custom_call.1} parent=35 // pred_fallthru
          _
        // Predicated region
        $region45: #{tpu_custom_call.1} parent=35 // pred_check
          %p517 = pneg %p231
        $region46: #{tpu_custom_call.1} parent=35 // pred_check_branch
          %519 = sbr.rel (%p517) target = $region48
        $region47: #{tpu_custom_call.1} parent=35 // pred_region
          %521 = vsyncadd %s479, 0
          %s522 = sadd.s32 %s30, %s31
          %s523 = smul.addr %s29, 4
          %s524 = sadd.s32 %s522, %s523
          %s525 = smul.addr %s524, 4
          %s526 = scalar_lea.hbm %s6, %s525
          %s528 = sshll.u32 %s482, 4
          %s529 = int_to_ptr.vmem [resolvable:$true] %s528
          %s530 = sshll.u32 %s526, 4
          %s531 = int_to_ptr.hbm [resolvable:$true] %s530
          %533 = dma.vmem_to_hbm [thread:$0]  %s529, 64, %s531, %s479
        $region48: #{tpu_custom_call.1} parent=35 // pred_fallthru
          _
      $region36: #{tpu_custom_call.1} parent=5 // pred_fallthru
        _
      %p534 = scmp.le.s32.totalorder 2, %s19
      // Predicated region
      $region49: #{tpu_custom_call.1} parent=5 // pred_check
        %p535 = pneg %p534
      $region50: #{tpu_custom_call.1} parent=5 // pred_check_branch
        %537 = sbr.rel (%p535) target = $region52
      $region51: #{tpu_custom_call.1} parent=5 // pred_region
        %s538 = ssub.s32 %s19, 2
        // Predicated region
        $region53: #{tpu_custom_call.1} parent=51 // pred_check
          %p539 = pneg %p177
        $region54: #{tpu_custom_call.1} parent=51 // pred_check_branch
          %541 = sbr.rel (%p539) target = $region56
        $region55: #{tpu_custom_call.1} parent=51 // pred_region
          %s542 = sand.u32 %s162, 1
          %s543 = scalar_lea.sflag [#allocation3], %s542
          %s544 = sand.u32 %s162, 1
          %s545 = smul.addr %s544, 4
          %s546 = scalar_lea.vmem [#allocation2], %s545
          %548 = dma.done %s543, 64
        $region56: #{tpu_custom_call.1} parent=51 // pred_fallthru
          _
        // Predicated region
        $region57: #{tpu_custom_call.1} parent=51 // pred_check
          %p549 = pneg %p207
        $region58: #{tpu_custom_call.1} parent=51 // pred_check_branch
          %551 = sbr.rel (%p549) target = $region60
        $region59: #{tpu_custom_call.1} parent=51 // pred_region
          %s552 = sand.u32 %s25, 1
          %s553 = scalar_lea.sflag [#allocation5], %s552
          %s554 = sand.u32 %s192, 1
          %s555 = smul.addr %s554, 4
          %s556 = scalar_lea.vmem [#allocation4], %s555
          %558 = dma.done %s553, 64
        $region60: #{tpu_custom_call.1} parent=51 // pred_fallthru
          _
        // Predicated region
        $region61: #{tpu_custom_call.1} parent=51 // pred_check
          %p559 = pneg %p237
        $region62: #{tpu_custom_call.1} parent=51 // pred_check_branch
          %561 = sbr.rel (%p559) target = $region64
        $region63: #{tpu_custom_call.1} parent=51 // pred_region
          %s562 = sand.u32 %s25, 1
          %s563 = scalar_lea.sflag [#allocation5], %s562
          %s564 = sand.u32 %s222, 1
          %s565 = smul.addr %s564, 4
          %s566 = scalar_lea.vmem [#allocation6], %s565
          %568 = dma.done %s563, 64
        $region64: #{tpu_custom_call.1} parent=51 // pred_fallthru
          _
      $region52: #{tpu_custom_call.1} parent=5 // pred_fallthru
        _
    $region6: #{tpu_custom_call.1} parent=1 // loop_footer
      %s23 = sadd.s32 1, %s19
    $region7: #{tpu_custom_call.1} parent=1 // loop_footer_branch
      %18 = sbr.rel target = $region3
    $region8: #{tpu_custom_call.1} parent=1 // loop_exit
      _
    %569 = vsyncpa [#allocation3], 1
    %s570 = scalar_lea.sflag [#allocation3], 1
    %571 = vsyncpa %s570, 1
    %572 = vsyncpa [#allocation5], 1
    %s573 = scalar_lea.sflag [#allocation5], 1
    %574 = vsyncpa %s573, 1

</llo_original>
